<compile_context>
chip_gen: v7x
topology: tpu7x:2x2x1
jax: 0.10.0
libtpu: 0.0.40
codegen_flags: <defaults>
</compile_context>

<pallas_src>
import functools

import jax
import jax.numpy as jnp
from jax.experimental import pallas as pl
from jax.experimental.pallas import tpu as pltpu


def _round_up(x, m):
    return (x + m - 1) // m * m


def _batch_block(b, cap=64):
    """Sublane-legal batch tile: == b when b < 8 (full-dim exemption),
    otherwise a multiple of 8 that does not exceed b."""
    if b <= 8:
        return b
    cap8 = max(8, (cap // 8) * 8)
    fit8 = max(8, (b // 8) * 8)
    return min(cap8, fit8)


def _node_block(m, tb, lane, itemsize, target_bytes):
    """Node-axis tile: == m when m <= 8, else a multiple of 8 <= m sized so a
    single VMEM buffer (including lane padding to 128) is ~target_bytes."""
    if m <= 8:
        return m
    bytes_per_row = max(1, tb * _round_up(lane, 128) * itemsize)
    t = max(8, min(target_bytes // bytes_per_row, m))
    return max(8, (t // 8) * 8)


# --------------------------------------------------------------------------
# Kernels
# --------------------------------------------------------------------------
def _pool_mlp_kernel(pooling_op, g, hidden, inv_n, true_m, mask_tail,
                     x_ref, w1_ref, b1_ref, w2_ref, b2_ref, o_ref, acc_ref):
    """mean/max pooling; node axis tiled on grid axis 1 (reduction, last).

    x_ref: (TB, TN, L) where L = 128 (folded, g = 128 // H) or L = H (g = 1).
    acc_ref: (TB, L) f32 running sum / max across node steps.
    """
    n_step = pl.program_id(1)
    tn = x_ref.shape[1]
    lane = x_ref.shape[2]

    # ReLU in the streamed dtype; mask the ragged node tail (stale VMEM) to 0.
    x = jnp.maximum(x_ref[...], 0)
    if mask_tail:
        row = n_step * tn + jax.lax.broadcasted_iota(jnp.int32, x.shape, 1)
        x = jnp.where(row < true_m, x, 0)

    if pooling_op == "mean":
        part = jnp.sum(x.astype(jnp.float32), axis=1)      # (TB, L)
    else:  # "max"
        part = jnp.max(x, axis=1).astype(jnp.float32)       # (TB, L)

    @pl.when(n_step == 0)
    def _():
        # 0 is the identity for the sum and for the post-ReLU max.
        acc_ref[...] = jnp.zeros_like(acc_ref)

    if pooling_op == "mean":
        acc_ref[...] = acc_ref[...] + part
    else:
        acc_ref[...] = jnp.maximum(acc_ref[...], part)

    # Finalize: fold lane groups, scale, tiny MLP, lane-dense store.
    @pl.when(n_step == pl.num_programs(1) - 1)
    def _():
        pooled = acc_ref[...]                                # (TB, L) f32
        if g > 1:
            shift = hidden
            while shift < lane:
                rolled = pltpu.roll(pooled, shift=shift, axis=1)
                if pooling_op == "mean":
                    pooled = pooled + rolled
                else:
                    pooled = jnp.maximum(pooled, rolled)
                shift *= 2
            # lanes >= hidden now hold partial cosets; w1's zero rows null them
        if pooling_op == "mean":
            pooled = pooled * inv_n                          # true node count
        h = jnp.dot(pooled, w1_ref[...], preferred_element_type=jnp.float32)
        h = jnp.maximum(h + b1_ref[...], 0.0)
        logits = jnp.dot(h, w2_ref[...], preferred_element_type=jnp.float32)
        o_ref[...] = (logits + b2_ref[...]).astype(o_ref.dtype)


def _last_mlp_kernel(x_ref, w1_ref, b1_ref, w2_ref, b2_ref, o_ref):
    """'last' pooling: x_ref is the pre-sliced [TB, H] last-node rows."""
    pooled = jnp.maximum(x_ref[...].astype(jnp.float32), 0.0)
    h = jnp.dot(pooled, w1_ref[...], preferred_element_type=jnp.float32)
    h = jnp.maximum(h + b1_ref[...], 0.0)
    logits = jnp.dot(h, w2_ref[...], preferred_element_type=jnp.float32)
    o_ref[...] = (logits + b2_ref[...]).astype(o_ref.dtype)


# --------------------------------------------------------------------------
# Wrappers
# --------------------------------------------------------------------------
def graph_classifier_forward_batched(x, w1, b1, w2, b2, *,
                                     pooling_op="mean",
                                     batch_block=64,
                                     x_buffer_bytes=8 * 1024 * 1024):
    """x: [B, N, H] node features for B graphs. Returns logits [B, C] (f32)."""
    b, n, h = x.shape
    assert w1.shape == (h, h), w1.shape
    c = w2.shape[1]
    c_pad = _round_up(c, 128)                       # lane-dense output block

    b1_2d = b1.reshape(1, h)
    w2p = jnp.zeros((h, c_pad), w2.dtype).at[:, :c].set(w2)
    b2p = jnp.zeros((1, c_pad), b2.dtype).at[0, :c].set(b2)

    tb = _batch_block(b, batch_block)

    # ---- 'last' pooling: only the last node row is ever read ---------------
    if pooling_op == "last":
        x_last = x[:, n - 1, :]                     # tiny [B, H] slice
        grid = (pl.cdiv(b, tb),)
        out = pl.pallas_call(
            _last_mlp_kernel,
            out_shape=jax.ShapeDtypeStruct((b, c_pad), jnp.float32),
            grid=grid,
            in_specs=[
                pl.BlockSpec((tb, h), lambda bi: (bi, 0)),
                pl.BlockSpec((h, h), lambda bi: (0, 0)),
                pl.BlockSpec((1, h), lambda bi: (0, 0)),
                pl.BlockSpec((h, c_pad), lambda bi: (0, 0)),
                pl.BlockSpec((1, c_pad), lambda bi: (0, 0)),
            ],
            out_specs=pl.BlockSpec((tb, c_pad), lambda bi: (bi, 0)),
            compiler_params=pltpu.CompilerParams(
                dimension_semantics=("parallel",)),
        )(x_last, w1, b1_2d, w2p, b2p)
        return out[:b, :c]

    if pooling_op not in ("mean", "max"):
        raise NotImplementedError(pooling_op)

    # ---- mean / max pooling -------------------------------------------------
    # Lane folding: view x as [B, N*H/128, 128] when the reshape is exact.
    if h < 128 and 128 % h == 0 and (n * h) % 128 == 0:
        g = 128 // h
        xv = x.reshape(b, (n * h) // 128, 128)      # free, contiguous view
    else:
        g = 1
        xv = x
    m, lane = xv.shape[1], xv.shape[2]

    tn = _node_block(m, tb, lane, xv.dtype.itemsize, x_buffer_bytes)
    grid = (pl.cdiv(b, tb), pl.cdiv(m, tn))
    mask_tail = (m % tn) != 0

    # w1 as [lane, H]; zero rows >= H null the folded accumulator's extra lanes.
    if g > 1:
        w1_eff = jnp.zeros((lane, h), w1.dtype).at[:h, :].set(w1)
    else:
        w1_eff = w1

    kernel = functools.partial(_pool_mlp_kernel, pooling_op, g, h,
                               1.0 / n, m, mask_tail)

    # VMEM budget (lane-padded): double-buffered x + weights + out + scratch.
    x_buf = 2 * tb * _round_up(tn, 8) * _round_up(lane, 128) * xv.dtype.itemsize
    wgt = 2 * (lane * h + h + h * c_pad + c_pad) * 4
    other = 2 * tb * c_pad * 4 + _round_up(tb, 8) * _round_up(lane, 128) * 4
    vmem_limit = int(min(48 << 20, max(32 << 20, 2 * (x_buf + wgt + other))))

    out = pl.pallas_call(
        kernel,
        out_shape=jax.ShapeDtypeStruct((b, c_pad), jnp.float32),
        grid=grid,
        in_specs=[
            pl.BlockSpec((tb, tn, lane), lambda bi, ni: (bi, ni, 0)),
            pl.BlockSpec((lane, h), lambda bi, ni: (0, 0)),
            pl.BlockSpec((1, h), lambda bi, ni: (0, 0)),
            pl.BlockSpec((h, c_pad), lambda bi, ni: (0, 0)),
            pl.BlockSpec((1, c_pad), lambda bi, ni: (0, 0)),
        ],
        out_specs=pl.BlockSpec((tb, c_pad), lambda bi, ni: (bi, 0)),
        scratch_shapes=[pltpu.VMEM((tb, lane), jnp.float32)],
        compiler_params=pltpu.CompilerParams(
            dimension_semantics=("parallel", "arbitrary"),
            vmem_limit_bytes=vmem_limit),
    )(xv, w1_eff, b1_2d, w2p, b2p)

    return out[:b, :c]


def graph_classifier_forward(x, w1, b1, w2, b2, *, pooling_op="mean", **kw):
    """x: [N, H] node features (the PyTorch module's contract). Returns [C]."""
    out = graph_classifier_forward_batched(x[None], w1, b1, w2, b2,
                                           pooling_op=pooling_op, **kw)
    return out[0]


# --------------------------------------------------------------------------
# Reference + test harness
# --------------------------------------------------------------------------
def _init_linear(key, fan_in, fan_out, dtype=jnp.float32):
    """PyTorch-style uniform(-1/sqrt(fan_in), 1/sqrt(fan_in)) init."""
    kw, kb = jax.random.split(key)
    bound = 1.0 / jnp.sqrt(jnp.asarray(fan_in, dtype))
    w = jax.random.uniform(kw, (fan_in, fan_out), dtype, -bound, bound)
    b = jax.random.uniform(kb, (fan_out,), dtype, -bound, bound)
    return w, b


def reference_forward_batched(x, w1, b1, w2, b2, pooling_op):
    xr = jnp.maximum(x, 0.0)
    if pooling_op == "mean":
        pooled = xr.mean(axis=1)
    elif pooling_op == "max":
        pooled = xr.max(axis=1)
    else:  # "last"
        pooled = xr[:, -1, :]
    h = jnp.maximum(pooled @ w1 + b1, 0.0)
    return h @ w2 + b2


if __name__ == "__main__":
    HIDDEN = 32
    # (B, N, C): exercises no-fold fallback + node masking, folded path,
    # and folded + ragged node/batch blocks.
    configs = [
        (3, 10, 4),    # N*H % 128 != 0  -> g=1 fallback, node tail mask
        (3, 16, 4),    # N*H % 128 == 0  -> g=4 lane folding, M=4
        (9, 48, 5),    # folding, M=12, ragged node + ragged batch blocks
    ]

    key = jax.random.PRNGKey(0)
    k1, k2, kx = jax.random.split(key, 3)

    for (B, N, NUM_CLASSES) in configs:
        kx, kd = jax.random.split(kx)
        x = jax.random.normal(kd, (B, N, HIDDEN), jnp.float32)
        w1, b1 = _init_linear(k1, HIDDEN, HIDDEN)
        w2, b2 = _init_linear(k2, HIDDEN, NUM_CLASSES)

        for pooling_op in ("mean", "max", "last"):
            out = graph_classifier_forward_batched(x, w1, b1, w2, b2,
                                                   pooling_op=pooling_op)
            out = jax.block_until_ready(out)
            ref = reference_forward_batched(x, w1, b1, w2, b2, pooling_op)
            assert out.shape == (B, NUM_CLASSES), (pooling_op, out.shape)
            assert jnp.allclose(out, ref, atol=1e-4, rtol=1e-4), \
                (pooling_op, B, N, NUM_CLASSES)

    # Single-graph API, matching the PyTorch module's [N, H] -> [C] forward.
    x1 = jax.random.normal(jax.random.PRNGKey(7), (10, HIDDEN), jnp.float32)
    w1, b1 = _init_linear(k1, HIDDEN, HIDDEN)
    w2, b2 = _init_linear(k2, HIDDEN, 4)
    for pooling_op in ("mean", "max", "last"):
        single = graph_classifier_forward(x1, w1, b1, w2, b2,
                                          pooling_op=pooling_op)
        single = jax.block_until_ready(single)
        ref_single = reference_forward_batched(x1[None], w1, b1, w2, b2,
                                               pooling_op)[0]
        assert single.shape == (4,)
        assert jnp.allclose(single, ref_single, atol=1e-4, rtol=1e-4), pooling_op

    print("KERNEL_OK")
</pallas_src>

<mosaic_0001>
module attributes {stable_mosaic.version = 11 : i64} {
  func.func @_pool_mlp_kernel(%arg0: i32, %arg1: i32, %arg2: memref<3x8x32xf32, #tpu.memory_space<vmem>>, %arg3: memref<32x32xf32, #tpu.memory_space<vmem>>, %arg4: memref<1x32xf32, #tpu.memory_space<vmem>>, %arg5: memref<32x128xf32, #tpu.memory_space<vmem>>, %arg6: memref<1x128xf32, #tpu.memory_space<vmem>>, %arg7: memref<3x128xf32, #tpu.memory_space<vmem>>, %arg8: memref<3x32xf32, #tpu.memory_space<vmem>>) attributes {dimension_semantics = [#tpu.dimension_semantics<parallel>, #tpu.dimension_semantics<arbitrary>], iteration_bounds = array<i64: 1, 2>, scalar_prefetch = 0 : i64, scratch_operands = 1 : i64, tpu.core_type = #tpu.core_type<tc>, window_params = [{transform_indices = @transform_0, window_bounds = array<i64: 3, 8, 32>}, {pipeline_mode = #tpu.pipeline_mode<synchronous>, transform_indices = @transform_1, window_bounds = array<i64: 32, 32>}, {pipeline_mode = #tpu.pipeline_mode<synchronous>, transform_indices = @transform_2, window_bounds = array<i64: 1, 32>}, {pipeline_mode = #tpu.pipeline_mode<synchronous>, transform_indices = @transform_3, window_bounds = array<i64: 32, 128>}, {pipeline_mode = #tpu.pipeline_mode<synchronous>, transform_indices = @transform_4, window_bounds = array<i64: 1, 128>}, {transform_indices = @transform_5, window_bounds = array<i64: 3, 128>}]} {
    %c0 = arith.constant 0 : index
    %c0_0 = arith.constant 0 : index
    %c0_1 = arith.constant 0 : index
    %0 = vector.load %arg2[%c0, %c0_0, %c0_1] : memref<3x8x32xf32, #tpu.memory_space<vmem>>, vector<3x8x32xf32>
    %cst = arith.constant 0.000000e+00 : f32
    %1 = vector.broadcast %cst : f32 to vector<3x8x32xf32>
    %2 = arith.maximumf %0, %1 : vector<3x8x32xf32>
    %c8_i32 = arith.constant 8 : i32
    %3 = arith.muli %arg1, %c8_i32 : i32
    %4 = tpu.iota {dimensions = array<i32: 1>} : vector<3x8x32xi32>
    %5 = vector.broadcast %3 : i32 to vector<3x8x32xi32>
    %6 = arith.addi %5, %4 : vector<3x8x32xi32>
    %c10_i32 = arith.constant 10 : i32
    %7 = vector.broadcast %c10_i32 : i32 to vector<3x8x32xi32>
    %8 = arith.cmpi slt, %6, %7 : vector<3x8x32xi32>
    %c0_i32 = arith.constant 0 : i32
    %9 = arith.sitofp %c0_i32 : i32 to f32
    %10 = vector.broadcast %9 : f32 to vector<3x8x32xf32>
    %11 = arith.select %8, %2, %10 : vector<3x8x32xi1>, vector<3x8x32xf32>
    %cst_2 = arith.constant dense<0.000000e+00> : vector<3x32xf32>
    %12 = vector.multi_reduction <add>, %11, %cst_2 [1] : vector<3x8x32xf32> to vector<3x32xf32>
    %c0_i32_3 = arith.constant 0 : i32
    %13 = arith.cmpi eq, %arg1, %c0_i32_3 : i32
    %14 = arith.extui %13 : i1 to i32
    %c0_i32_4 = arith.constant 0 : i32
    %15 = arith.cmpi ne, %14, %c0_i32_4 : i32
    scf.if %15 {
      %cst_10 = arith.constant 0.000000e+00 : f32
      %22 = vector.broadcast %cst_10 : f32 to vector<3x32xf32>
      %c0_11 = arith.constant 0 : index
      %c0_12 = arith.constant 0 : index
      %23 = vector.load %arg8[%c0_11, %c0_12] : memref<3x32xf32, #tpu.memory_space<vmem>>, vector<3x32xf32>
      tpu.vector_store %arg8[%c0_11, %c0_12], %22 {strides = array<i32>} : memref<3x32xf32, #tpu.memory_space<vmem>>, vector<3x32xf32>,
    } else {
    }
    %c0_5 = arith.constant 0 : index
    %c0_6 = arith.constant 0 : index
    %16 = vector.load %arg8[%c0_5, %c0_6] : memref<3x32xf32, #tpu.memory_space<vmem>>, vector<3x32xf32>
    %17 = arith.addf %16, %12 : vector<3x32xf32>
    %c0_7 = arith.constant 0 : index
    %c0_8 = arith.constant 0 : index
    %18 = vector.load %arg8[%c0_7, %c0_8] : memref<3x32xf32, #tpu.memory_space<vmem>>, vector<3x32xf32>
    tpu.vector_store %arg8[%c0_7, %c0_8], %17 {strides = array<i32>} : memref<3x32xf32, #tpu.memory_space<vmem>>, vector<3x32xf32>,
    %c1_i32 = arith.constant 1 : i32
    %19 = arith.cmpi eq, %arg1, %c1_i32 : i32
    %20 = arith.extui %19 : i1 to i32
    %c0_i32_9 = arith.constant 0 : i32
    %21 = arith.cmpi ne, %20, %c0_i32_9 : i32
    scf.if %21 {
      %c0_10 = arith.constant 0 : index
      %c0_11 = arith.constant 0 : index
      %22 = vector.load %arg8[%c0_10, %c0_11] : memref<3x32xf32, #tpu.memory_space<vmem>>, vector<3x32xf32>
      %cst_12 = arith.constant 1.000000e-01 : f32
      %23 = vector.broadcast %cst_12 : f32 to vector<3x32xf32>
      %24 = arith.mulf %22, %23 : vector<3x32xf32>
      %c0_13 = arith.constant 0 : index
      %c0_14 = arith.constant 0 : index
      %25 = vector.load %arg3[%c0_13, %c0_14] : memref<32x32xf32, #tpu.memory_space<vmem>>, vector<32x32xf32>
      %cst_15 = arith.constant dense<0.000000e+00> : vector<3x32xf32>
      %26 = tpu.matmul %24, %25, %cst_15 {dimension_numbers = #tpu.dot_dimension_numbers<[1], [0], [0], [1], [0, 0, 1, 1], [], []>} : vector<3x32xf32>, vector<32x32xf32>, vector<3x32xf32> -> vector<3x32xf32>
      %c0_16 = arith.constant 0 : index
      %c0_17 = arith.constant 0 : index
      %27 = vector.load %arg4[%c0_16, %c0_17] : memref<1x32xf32, #tpu.memory_space<vmem>>, vector<1x32xf32>
      %28 = vector.broadcast %27 : vector<1x32xf32> to vector<3x32xf32>
      %29 = arith.addf %26, %28 : vector<3x32xf32>
      %cst_18 = arith.constant 0.000000e+00 : f32
      %30 = vector.broadcast %cst_18 : f32 to vector<3x32xf32>
      %31 = arith.maximumf %29, %30 : vector<3x32xf32>
      %c0_19 = arith.constant 0 : index
      %c0_20 = arith.constant 0 : index
      %32 = vector.load %arg5[%c0_19, %c0_20] : memref<32x128xf32, #tpu.memory_space<vmem>>, vector<32x128xf32>
      %cst_21 = arith.constant dense<0.000000e+00> : vector<3x128xf32>
      %33 = tpu.matmul %31, %32, %cst_21 {dimension_numbers = #tpu.dot_dimension_numbers<[1], [0], [0], [1], [0, 0, 1, 1], [], []>} : vector<3x32xf32>, vector<32x128xf32>, vector<3x128xf32> -> vector<3x128xf32>
      %c0_22 = arith.constant 0 : index
      %c0_23 = arith.constant 0 : index
      %34 = vector.load %arg6[%c0_22, %c0_23] : memref<1x128xf32, #tpu.memory_space<vmem>>, vector<1x128xf32>
      %35 = vector.broadcast %34 : vector<1x128xf32> to vector<3x128xf32>
      %36 = arith.addf %33, %35 : vector<3x128xf32>
      %c0_24 = arith.constant 0 : index
      %c0_25 = arith.constant 0 : index
      %37 = vector.load %arg7[%c0_24, %c0_25] : memref<3x128xf32, #tpu.memory_space<vmem>>, vector<3x128xf32>
      tpu.vector_store %arg7[%c0_24, %c0_25], %36 {strides = array<i32>} : memref<3x128xf32, #tpu.memory_space<vmem>>, vector<3x128xf32>,
    } else {
    }
    return
  }
  func.func @transform_0(%arg0: i32, %arg1: i32) -> (i32, i32, i32) {
    %c0_i32 = arith.constant 0 : i32
    %c0_i32_0 = arith.constant 0 : i32
    return %arg0, %arg1, %c0_i32 : i32, i32, i32
  }
  func.func @transform_1(%arg0: i32, %arg1: i32) -> (i32, i32) {
    %c0_i32 = arith.constant 0 : i32
    %c0_i32_0 = arith.constant 0 : i32
    %c0_i32_1 = arith.constant 0 : i32
    return %c0_i32, %c0_i32_0 : i32, i32
  }
  func.func @transform_2(%arg0: i32, %arg1: i32) -> (i32, i32) {
    %c0_i32 = arith.constant 0 : i32
    %c0_i32_0 = arith.constant 0 : i32
    %c0_i32_1 = arith.constant 0 : i32
    return %c0_i32, %c0_i32_0 : i32, i32
  }
  func.func @transform_3(%arg0: i32, %arg1: i32) -> (i32, i32) {
    %c0_i32 = arith.constant 0 : i32
    %c0_i32_0 = arith.constant 0 : i32
    %c0_i32_1 = arith.constant 0 : i32
    return %c0_i32, %c0_i32_0 : i32, i32
  }
  func.func @transform_4(%arg0: i32, %arg1: i32) -> (i32, i32) {
    %c0_i32 = arith.constant 0 : i32
    %c0_i32_0 = arith.constant 0 : i32
    %c0_i32_1 = arith.constant 0 : i32
    return %c0_i32, %c0_i32_0 : i32, i32
  }
  func.func @transform_5(%arg0: i32, %arg1: i32) -> (i32, i32) {
    %c0_i32 = arith.constant 0 : i32
    %c0_i32_0 = arith.constant 0 : i32
    return %arg0, %c0_i32 : i32, i32
  }
}

</mosaic_0001>

<llo_original>
// kernel: tpu_custom_call.1
$region0: #{tpu_custom_call.1}
  #allocation0 [shape = 'u32[]', space=smem, size = 0x4, offset = 0x4, fixed_abs, tag = 'smem constant byte address 0x4 - core index']
  #allocation1 [shape = 'u32[144,128]{1,0:T(1,128)}', space=vmem, size = 0x12000, scoped, tag = 'internal scratch']
  #allocation2 [shape = 'f32[3,32]{1,0:T(4,128)}', space=vmem, size = 0x800, scoped, tag = 'scratch operand']
  %s0 = inlined_call_operand.vmem [shape: f32[3,10,32], index: 0, kind: input, shape index: {}]
  %s1 = inlined_call_operand.vmem [shape: f32[32,32], index: 1, kind: input, shape index: {}]
  %s2 = inlined_call_operand.vmem [shape: f32[1,32], index: 2, kind: input, shape index: {}]
  %s3 = inlined_call_operand.vmem [shape: f32[32,128], index: 3, kind: input, shape index: {}]
  %s4 = inlined_call_operand.vmem [shape: f32[1,128], index: 4, kind: input, shape index: {}]
  %s5 = inlined_call_operand.hbm [shape: f32[3,128], index: 5, kind: output, shape index: {}]
  %s6 = sld [smem:[#allocation0]]
  $region99: #{tpu_custom_call.1} parent=0
    _
  %s8 = ssub.s32 1, %s6
  %s9 = scalar_select 0, %s8, %s6
  $region1: #{tpu_custom_call.1} parent=0
    #allocation3 [shape = 'u8[24576]{0}', space=vmem, size = 0x6000, scoped, tag = 'input window, operand 0']
    #allocation4 [shape = 'u8[2048]{0}', space=vmem, size = 0x800, scoped, tag = 'output window, operand 0, single buffered']
    #allocation5 [shape = 's32[2]{0}', space=sflag, size = 0x8, scoped, tag = 'scoped memory for tpu_custom_call.1']
    %10 = vsyncpa [#allocation5], 0
    loop: start=0, step=1, limit=4
    $region2: #{tpu_custom_call.1} parent=1 // loop_pre_header
      _
    $region3: #{tpu_custom_call.1} parent=1 // loop_header
      %s12 = sphi 0, %s16
      %p13 = scmp.ge.s32.totalorder %s12, 4
      %s19 = sphi 0, %s31
      %s20 = sphi 0, %s27
      %s21 = sphi 0, %s19
      %s22 = sphi 0, %s20
      %s23 = sphi 0, %s21
      %s24 = sphi 0, %s22
      %s36 = sphi 0, %s38
      %s39 = sphi 0, %s36
      %s40 = sphi 0, %s39
      %s56 = sphi 0, %s40
      %s60 = sphi 0, %s60
      %s62 = sphi 0, %s60
      %s63 = sphi 0, %s62
      %s77 = sphi 0, %s63
      %s81 = sphi 0, %s81
      %s83 = sphi 0, %s81
      %s84 = sphi 0, %s83
      %s98 = sphi 0, %s84
      %s102 = sphi 0, %s102
      %s104 = sphi 0, %s102
      %s105 = sphi 0, %s104
      %s119 = sphi 0, %s105
      %s123 = sphi 0, %s123
      %s125 = sphi 0, %s123
      %s126 = sphi 0, %s125
      %s140 = sphi 0, %s126
      %s146 = sphi 0, %s148
      %s149 = sphi 0, %s146
      %s150 = sphi 0, %s149
      %s166 = sphi 0, %s150
    $region4: #{tpu_custom_call.1} parent=1 // loop_header_branch
      %15 = sbr.rel (%p13) target = $region8
    $region5: #{tpu_custom_call.1} parent=1 // loop_body
      %s17 = ssub.s32 %s12, 1
      %s18 = ssub.s32 %s12, 2
      %s25 = sadd.s32 1, %s20
      %p26 = scmp.ge.s32.totalorder %s25, 2
      %s27 = scalar_select %p26, 0, %s25
      %s28 = sadd.s32 1, %s19
      %s29 = scalar_select %p26, %s28, %s19
      %p30 = scmp.ge.s32.totalorder %s29, 1
      %s31 = scalar_select %p30, 0, %s29
      %s32 = ssub.s32 %s19, %s31
      %s33 = ssub.s32 %s20, %s27
      %s34 = sor.u32 %s32, %s33
      %p35 = scmp.eq.s32.totalorder %s34, 0
      %s37 = sadd.s32 %s36, 1
      %s38 = scalar_select %p35, %s36, %s37
      %p41 = pneg %p35
      %p42 = scmp.eq.s32.totalorder %s12, 1
      %p43 = por %p41, %p42
      %p44 = scmp.ne.s32.totalorder %s36, %s39
      %p45 = scmp.eq.s32.totalorder %s12, 0
      %p46 = por %p44, %p45
      %p47 = scmp.ne.s32.totalorder %s36, %s39
      %p48 = scmp.eq.s32.totalorder %s17, 1
      %p49 = por %p47, %p48
      %p50 = scmp.ne.s32.totalorder %s39, %s40
      %p51 = scmp.eq.s32.totalorder %s17, 0
      %p52 = por %p50, %p51
      %p53 = scmp.ne.s32.totalorder %s39, %s40
      %p54 = scmp.eq.s32.totalorder %s18, 1
      %p55 = por %p53, %p54
      %p57 = scmp.ne.s32.totalorder %s40, %s56
      %p58 = scmp.eq.s32.totalorder %s18, 0
      %p59 = por %p57, %p58
      %s61 = sadd.s32 %s60, 1
      %p64 = scmp.eq.s32.totalorder %s12, 1
      %p65 = scmp.ne.s32.totalorder %s60, %s62
      %p66 = scmp.eq.s32.totalorder %s12, 0
      %p67 = por %p65, %p66
      %p68 = scmp.ne.s32.totalorder %s60, %s62
      %p69 = scmp.eq.s32.totalorder %s17, 1
      %p70 = por %p68, %p69
      %p71 = scmp.ne.s32.totalorder %s62, %s63
      %p72 = scmp.eq.s32.totalorder %s17, 0
      %p73 = por %p71, %p72
      %p74 = scmp.ne.s32.totalorder %s62, %s63
      %p75 = scmp.eq.s32.totalorder %s18, 1
      %p76 = por %p74, %p75
      %p78 = scmp.ne.s32.totalorder %s63, %s77
      %p79 = scmp.eq.s32.totalorder %s18, 0
      %p80 = por %p78, %p79
      %s82 = sadd.s32 %s81, 1
      %p85 = scmp.eq.s32.totalorder %s12, 1
      %p86 = scmp.ne.s32.totalorder %s81, %s83
      %p87 = scmp.eq.s32.totalorder %s12, 0
      %p88 = por %p86, %p87
      %p89 = scmp.ne.s32.totalorder %s81, %s83
      %p90 = scmp.eq.s32.totalorder %s17, 1
      %p91 = por %p89, %p90
      %p92 = scmp.ne.s32.totalorder %s83, %s84
      %p93 = scmp.eq.s32.totalorder %s17, 0
      %p94 = por %p92, %p93
      %p95 = scmp.ne.s32.totalorder %s83, %s84
      %p96 = scmp.eq.s32.totalorder %s18, 1
      %p97 = por %p95, %p96
      %p99 = scmp.ne.s32.totalorder %s84, %s98
      %p100 = scmp.eq.s32.totalorder %s18, 0
      %p101 = por %p99, %p100
      %s103 = sadd.s32 %s102, 1
      %p106 = scmp.eq.s32.totalorder %s12, 1
      %p107 = scmp.ne.s32.totalorder %s102, %s104
      %p108 = scmp.eq.s32.totalorder %s12, 0
      %p109 = por %p107, %p108
      %p110 = scmp.ne.s32.totalorder %s102, %s104
      %p111 = scmp.eq.s32.totalorder %s17, 1
      %p112 = por %p110, %p111
      %p113 = scmp.ne.s32.totalorder %s104, %s105
      %p114 = scmp.eq.s32.totalorder %s17, 0
      %p115 = por %p113, %p114
      %p116 = scmp.ne.s32.totalorder %s104, %s105
      %p117 = scmp.eq.s32.totalorder %s18, 1
      %p118 = por %p116, %p117
      %p120 = scmp.ne.s32.totalorder %s105, %s119
      %p121 = scmp.eq.s32.totalorder %s18, 0
      %p122 = por %p120, %p121
      %s124 = sadd.s32 %s123, 1
      %p127 = scmp.eq.s32.totalorder %s12, 1
      %p128 = scmp.ne.s32.totalorder %s123, %s125
      %p129 = scmp.eq.s32.totalorder %s12, 0
      %p130 = por %p128, %p129
      %p131 = scmp.ne.s32.totalorder %s123, %s125
      %p132 = scmp.eq.s32.totalorder %s17, 1
      %p133 = por %p131, %p132
      %p134 = scmp.ne.s32.totalorder %s125, %s126
      %p135 = scmp.eq.s32.totalorder %s17, 0
      %p136 = por %p134, %p135
      %p137 = scmp.ne.s32.totalorder %s125, %s126
      %p138 = scmp.eq.s32.totalorder %s18, 1
      %p139 = por %p137, %p138
      %p141 = scmp.ne.s32.totalorder %s126, %s140
      %p142 = scmp.eq.s32.totalorder %s18, 0
      %p143 = por %p141, %p142
      %s144 = ssub.s32 %s19, %s31
      %p145 = scmp.eq.s32.totalorder %s144, 0
      %s147 = sadd.s32 %s146, 1
      %s148 = scalar_select %p145, %s146, %s147
      %p151 = pneg %p145
      %p152 = scmp.eq.s32.totalorder %s12, 1
      %p153 = por %p151, %p152
      %p154 = scmp.ne.s32.totalorder %s146, %s149
      %p155 = scmp.eq.s32.totalorder %s12, 0
      %p156 = por %p154, %p155
      %p157 = scmp.ne.s32.totalorder %s146, %s149
      %p158 = scmp.eq.s32.totalorder %s17, 1
      %p159 = por %p157, %p158
      %p160 = scmp.ne.s32.totalorder %s149, %s150
      %p161 = scmp.eq.s32.totalorder %s17, 0
      %p162 = por %p160, %p161
      %p163 = scmp.ne.s32.totalorder %s149, %s150
      %p164 = scmp.eq.s32.totalorder %s18, 1
      %p165 = por %p163, %p164
      %p167 = scmp.ne.s32.totalorder %s150, %s166
      %p168 = scmp.eq.s32.totalorder %s18, 0
      %p169 = por %p167, %p168
      %p170 = scmp.le.s32.totalorder 1, %s12
      %p171 = scmp.lt.s32.totalorder %s12, 3
      %p172 = pnand %p170, %p171
      %p173 = pneg %p172
      // Predicated region
      $region9: #{tpu_custom_call.1} parent=5 // pred_check
        _
      $region10: #{tpu_custom_call.1} parent=5 // pred_check_branch
        %175 = sbr.rel (%p172) target = $region12
      $region11: #{tpu_custom_call.1} parent=5 // pred_region
        %s176 = ssub.s32 %s12, 1
        // Predicated region
        $region13: #{tpu_custom_call.1} parent=11 // pred_check
          %p177 = pneg %p73
        $region14: #{tpu_custom_call.1} parent=11 // pred_check_branch
          %179 = sbr.rel (%p177) target = $region16
        $region15: #{tpu_custom_call.1} parent=11 // pred_region
          _
        $region16: #{tpu_custom_call.1} parent=11 // pred_fallthru
          _
        // Predicated region
        $region17: #{tpu_custom_call.1} parent=11 // pred_check
          %p180 = pneg %p94
        $region18: #{tpu_custom_call.1} parent=11 // pred_check_branch
          %182 = sbr.rel (%p180) target = $region20
        $region19: #{tpu_custom_call.1} parent=11 // pred_region
          _
        $region20: #{tpu_custom_call.1} parent=11 // pred_fallthru
          _
        // Predicated region
        $region21: #{tpu_custom_call.1} parent=11 // pred_check
          %p183 = pneg %p115
        $region22: #{tpu_custom_call.1} parent=11 // pred_check_branch
          %185 = sbr.rel (%p183) target = $region24
        $region23: #{tpu_custom_call.1} parent=11 // pred_region
          _
        $region24: #{tpu_custom_call.1} parent=11 // pred_fallthru
          _
        // Predicated region
        $region25: #{tpu_custom_call.1} parent=11 // pred_check
          %p186 = pneg %p136
        $region26: #{tpu_custom_call.1} parent=11 // pred_check_branch
          %188 = sbr.rel (%p186) target = $region28
        $region27: #{tpu_custom_call.1} parent=11 // pred_region
          _
        $region28: #{tpu_custom_call.1} parent=11 // pred_fallthru
          _
      $region12: #{tpu_custom_call.1} parent=5 // pred_fallthru
        _
      %p189 = scmp.lt.s32.totalorder %s12, 2
      // Predicated region
      $region29: #{tpu_custom_call.1} parent=5 // pred_check
        %p190 = pneg %p189
      $region30: #{tpu_custom_call.1} parent=5 // pred_check_branch
        %192 = sbr.rel (%p190) target = $region32
      $region31: #{tpu_custom_call.1} parent=5 // pred_region
        // Predicated region
        $region33: #{tpu_custom_call.1} parent=31 // pred_check
          %p193 = pneg %p46
        $region34: #{tpu_custom_call.1} parent=31 // pred_check_branch
          %195 = sbr.rel (%p193) target = $region36
        $region35: #{tpu_custom_call.1} parent=31 // pred_region
          %s196 = sand.u32 %s36, 1
          %s197 = sand.u32 %s36, 1
          %s198 = smul.addr %s197, 24
          %s199 = scalar_lea.vmem [#allocation3], %s198
          %s200 = smul.u32 3, %s19
          %s201 = smul.addr %s200, 2
          %s202 = sadd.s32 %s20, %s201
          %s203 = smul.addr %s202, 8
          %s204 = scalar_lea.vmem %s0, %s203
          // Predicated region
          $region37: #{tpu_custom_call.1} parent=35 // pred_check
            _
          $region38: #{tpu_custom_call.1} parent=35 // pred_check_branch
            %206 = sbr.rel (0) target = $region40
          $region39: #{tpu_custom_call.1} parent=35 // pred_region
            // Predicated region
            $region41: #{tpu_custom_call.1} parent=39 // pred_check
              _
            $region42: #{tpu_custom_call.1} parent=39 // pred_check_branch
              %208 = sbr.rel (0) target = $region44
            $region43: #{tpu_custom_call.1} parent=39 // pred_region
              // Predicated region
              $region56: #{tpu_custom_call.1} parent=43 // pred_check
                _
              $region57: #{tpu_custom_call.1} parent=43 // pred_check_branch
                %227 = sbr.rel (0) target = $region59
              $region58: #{tpu_custom_call.1} parent=43 // pred_region
                loop: start=0, step=1, limit=1
                $region60: #{tpu_custom_call.1} parent=58 // loop_pre_header
                  _
                $region61: #{tpu_custom_call.1} parent=58 // loop_header
                  %s229 = sphi 0, %s233
                  %p230 = scmp.ge.s32.totalorder %s229, 1
                  %s234 = sphi %s204, %s204
                  %s235 = sphi %s199, %s199
                $region62: #{tpu_custom_call.1} parent=58 // loop_header_branch
                  %232 = sbr.rel (%p230) target = $region66
                $region63: #{tpu_custom_call.1} parent=58 // loop_body
                  %v236 = vld [vmem:[%s234] sm:$0xff]
                  %237 = vst [vmem:[%s235] sm:$0xff] %v236
                  %v238 = vld [vmem:[%s234 + $0x10] sm:$0xff]
                  %239 = vst [vmem:[%s235 + $0x8] sm:$0xff] %v238
                  %v240 = vld [vmem:[%s234 + $0x20] sm:$0xff]
                  %241 = vst [vmem:[%s235 + $0x10] sm:$0xff] %v240
                $region64: #{tpu_custom_call.1} parent=58 // loop_footer
                  %s233 = sadd.s32 1, %s229
                $region65: #{tpu_custom_call.1} parent=58 // loop_footer_branch
                  %228 = sbr.rel target = $region61
                $region66: #{tpu_custom_call.1} parent=58 // loop_exit
                  _
              $region59: #{tpu_custom_call.1} parent=43 // pred_fallthru
                _
              // Predicated region
              $region67: #{tpu_custom_call.1} parent=43 // pred_check
                _
              $region68: #{tpu_custom_call.1} parent=43 // pred_check_branch
                %243 = sbr.rel target = $region70
              $region69: #{tpu_custom_call.1} parent=43 // pred_region
                _
              $region70: #{tpu_custom_call.1} parent=43 // pred_fallthru
                _
            $region44: #{tpu_custom_call.1} parent=39 // pred_fallthru
              _
            // Predicated region
            $region45: #{tpu_custom_call.1} parent=39 // pred_check
              _
            $region46: #{tpu_custom_call.1} parent=39 // pred_check_branch
              %210 = sbr.rel target = $region48
            $region47: #{tpu_custom_call.1} parent=39 // pred_region
              loop: start=0, step=1, limit=1
              $region49: #{tpu_custom_call.1} parent=47 // loop_pre_header
                _
              $region50: #{tpu_custom_call.1} parent=47 // loop_header
                %s213 = sphi 0, %s217
                %p214 = scmp.ge.s32.totalorder %s213, 1
                %s218 = sphi %s204, %s204
                %s219 = sphi %s199, %s199
              $region51: #{tpu_custom_call.1} parent=47 // loop_header_branch
                %216 = sbr.rel (%p214) target = $region55
              $region52: #{tpu_custom_call.1} parent=47 // loop_body
                %v220 = vld [vmem:[%s218] sm:$0xff]
                %221 = vst [vmem:[%s219] sm:$0xff] %v220
                %v222 = vld [vmem:[%s218 + $0x10] sm:$0xff]
                %223 = vst [vmem:[%s219 + $0x8] sm:$0xff] %v222
                %v224 = vld [vmem:[%s218 + $0x20] sm:$0xff]
                %225 = vst [vmem:[%s219 + $0x10] sm:$0xff] %v224
              $region53: #{tpu_custom_call.1} parent=47 // loop_footer
                %s217 = sadd.s32 1, %s213
              $region54: #{tpu_custom_call.1} parent=47 // loop_footer_branch
                %212 = sbr.rel target = $region50
              $region55: #{tpu_custom_call.1} parent=47 // loop_exit
                _
            $region48: #{tpu_custom_call.1} parent=39 // pred_fallthru
              _
          $region40: #{tpu_custom_call.1} parent=35 // pred_fallthru
            _
          %244 = vnop
        $region36: #{tpu_custom_call.1} parent=31 // pred_fallthru
          _
      $region32: #{tpu_custom_call.1} parent=5 // pred_fallthru
        _
      %p245 = scmp.le.s32.totalorder 1, %s12
      %p246 = scmp.lt.s32.totalorder %s12, 3
      %p247 = pnand %p245, %p246
      %p248 = pneg %p247
      // Predicated region
      $region71: #{tpu_custom_call.1} parent=5 // pred_check
        _
      $region72: #{tpu_custom_call.1} parent=5 // pred_check_branch
        %250 = sbr.rel (%p247) target = $region74
      $region73: #{tpu_custom_call.1} parent=5 // pred_region
        %s251 = ssub.s32 %s12, 1
        %s252 = sand.u32 %s39, 1
        %s253 = sand.u32 %s39, 1
        %s254 = smul.addr %s253, 24
        %s255 = scalar_lea.vmem [#allocation3], %s254
        // Predicated region
        $region75: #{tpu_custom_call.1} parent=73 // pred_check
          %p256 = pneg %p52
        $region76: #{tpu_custom_call.1} parent=73 // pred_check_branch
          %258 = sbr.rel (%p256) target = $region78
        $region77: #{tpu_custom_call.1} parent=73 // pred_region
          _
        $region78: #{tpu_custom_call.1} parent=73 // pred_fallthru
          _
        %s259 = sand.u32 %s39, 1
        %s260 = sand.u32 %s39, 1
        %s261 = smul.addr %s260, 24
        %s262 = scalar_lea.vmem [#allocation3], %s261
        %p263 = pneg %p52
        %p264 = pneg %p49
        %p265 = pneg %p73
        %p266 = pneg %p70
        %p267 = pneg %p94
        %p268 = pneg %p91
        %p269 = pneg %p115
        %p270 = pneg %p112
        %p271 = pneg %p136
        %p272 = pneg %p133
        %p273 = pneg %p162
        %p274 = pneg %p159
        %s275 = smul.u32 3, %s21
        %v276 = vld [vmem:[%s255] sm:$0xff]
        %v277 = vld [vmem:[%s255 + $0x8] sm:$0xff]
        %v278 = vld [vmem:[%s255 + $0x10] sm:$0xff]
        %v279 = vmax.f32 %v276, 0.0
        %v280 = vmax.f32 %v277, 0.0
        %v281 = vmax.f32 %v278, 0.0
        %s282 = smul.u32 %s22, 8
        %v283 = vlaneseq
        %v284 = vshrl.u32 %v283, 7
        %v285 = vstv %s282
        %v286 = vadd.s32 %v285, %v284
        %vm287 = vcmp.lt.s32.totalorder %v286, 10
        %v288 = vsel %vm287, %v279, 0.0
        %v289 = vsel %vm287, %v280, 0.0
        %v290 = vsel %vm287, %v281, 0.0
        %vm291 = vcmask 261120
        %v292 = vsel %vm291, %v288, 0.0
        %v293 = vrot.slane %v292, 4
        %v294 = vadd.f32 %v292, %v293
        %v295 = vrot.slane %v294, 2
        %v296 = vadd.f32 %v294, %v295
        %v297 = vrot.slane %v296, 1
        %v298 = vadd.f32 %v296, %v297
        %v299 = vsel %vm291, %v289, 0.0
        %v300 = vrot.slane %v299, 4
        %v301 = vadd.f32 %v299, %v300
        %v302 = vrot.slane %v301, 2
        %v303 = vadd.f32 %v301, %v302
        %v304 = vrot.slane %v303, 1
        %v305 = vadd.f32 %v303, %v304
        %v306 = vsel %vm291, %v290, 0.0
        %v307 = vrot.slane %v306, 4
        %v308 = vadd.f32 %v306, %v307
        %v309 = vrot.slane %v308, 2
        %v310 = vadd.f32 %v308, %v309
        %v311 = vrot.slane %v310, 1
        %v312 = vadd.f32 %v310, %v311
        %p313 = scmp.eq.s32.totalorder %s22, 0
        // Predicated region
        $region79: #{tpu_custom_call.1} parent=73 // pred_check
          %p314 = pneg %p313
        $region80: #{tpu_custom_call.1} parent=73 // pred_check_branch
          %316 = sbr.rel (%p314) target = $region82
        $region81: #{tpu_custom_call.1} parent=73 // pred_region
          %vm317 = vcmask 256000
          %318 = vst.msk [vmem:[#allocation2] sm:$0x7] %vm317, 0.0
        $region82: #{tpu_custom_call.1} parent=73 // pred_fallthru
          _
        %v319 = vld [vmem:[#allocation2] sm:$0x7]
        %vm323 = vcmask 1041409
        %v324 = vsel %vm323, %v305, %v298
        %vm325 = vcmask 1042434
        %v326 = vsel %vm325, %v312, %v324
        %v328 = vadd.f32 %v319, %v326
        %vm329 = vcmask 256000
        %330 = vst.msk [vmem:[#allocation2] sm:$0x7] %vm329, %v328
        %p331 = scmp.eq.s32.totalorder %s22, 1
        // Predicated region
        $region83: #{tpu_custom_call.1} parent=73 // pred_check
          %p332 = pneg %p331
        $region84: #{tpu_custom_call.1} parent=73 // pred_check_branch
          %334 = sbr.rel (%p332) target = $region86
        $region85: #{tpu_custom_call.1} parent=73 // pred_region
          %v335 = vld [vmem:[#allocation2] sm:$0x7]
          %v336 = vmul.f32 %v335, 0.1
          %v337 = vld [vmem:[%s1] sm:$0xff]
          %v338 = vld [vmem:[%s1 + $0x8] sm:$0xff]
          %v339 = vld [vmem:[%s1 + $0x10] sm:$0xff]
          %v340 = vld [vmem:[%s1 + $0x18] sm:$0xff]
          %v341 = vld [vmem:[%s2] sm:$0x1]
          %v343 = vlaneseq
          %v344 = vshrl.u32 %v343, 7
          %v345 = vsub.s32 0, %v344
          %v346 = vrot.slane %v341, %v345
          %v349 = vsel %vm291, %v336, 0
          %351 = vmatprep.subr.mxu0 0.0
          %352 = vmatpush1.msra.mxu0 %v337
          %353 = vmatprep.subr.mxu0 0.0
          %354 = vmatpush1.msra.mxu0 %v338
          %355 = vmatprep.subr.mxu0 0.0
          %356 = vmatpush1.msra.mxu0 %v339
          %357 = vmatprep.subr.mxu0 0.0
          %358 = vmatpush1.msra.mxu0 %v340
          %359 = vmatprep.subr.mxu0 0.0
          %360 = vmatpush1.msra.mxu0 0.0
          %361 = vmatprep.subr.mxu0 0.0
          %362 = vmatpush1.msra.mxu0 0.0
          %363 = vmatprep.subr.mxu0 0.0
          %364 = vmatpush1.msra.mxu0 0.0
          %365 = vmatprep.subr.mxu0 0.0
          %366 = vmatpush1.msra.mxu0 0.0
          %367 = vmatprep.subr.mxu0 0.0
          %368 = vmatpush1.msra.mxu0 0.0
          %369 = vmatprep.subr.mxu0 0.0
          %370 = vmatpush1.msra.mxu0 0.0
          %371 = vmatprep.subr.mxu0 0.0
          %372 = vmatpush1.msra.mxu0 0.0
          %373 = vmatprep.subr.mxu0 0.0
          %374 = vmatpush1.msra.mxu0 0.0
          %375 = vmatprep.subr.mxu0 0.0
          %376 = vmatpush1.msra.mxu0 0.0
          %377 = vmatprep.subr.mxu0 0.0
          %378 = vmatpush1.msra.mxu0 0.0
          %379 = vmatprep.subr.mxu0 0.0
          %380 = vmatpush1.msra.mxu0 0.0
          %381 = vmatprep.subr.mxu0 0.0
          %382 = vmatpush1.msra.mxu0 0.0
          %383 = vmatprep.subr.mxu0 0.0
          %384 = vmatpush1.msra.mxu0 0.0
          %385 = vmatprep.subr.mxu0 0.0
          %386 = vmatpush1.msra.mxu0 0.0
          %387 = vmatprep.subr.mxu0 0.0
          %388 = vmatpush1.msra.mxu0 0.0
          %389 = vmatprep.subr.mxu0 0.0
          %390 = vmatpush1.msra.mxu0 0.0
          %391 = vmatprep.subr.mxu0 0.0
          %392 = vmatpush1.msra.mxu0 0.0
          %393 = vmatprep.subr.mxu0 0.0
          %394 = vmatpush1.msra.mxu0 0.0
          %395 = vmatprep.subr.mxu0 0.0
          %396 = vmatpush1.msra.mxu0 0.0
          %397 = vmatprep.subr.mxu0 0.0
          %398 = vmatpush1.msra.mxu0 0.0
          %399 = vmatprep.subr.mxu0 0.0
          %400 = vmatpush1.msra.mxu0 0.0
          %401 = vmatprep.subr.mxu0 0.0
          %402 = vmatpush1.msra.mxu0 0.0
          %403 = vmatprep.subr.mxu0 0.0
          %404 = vmatpush1.msra.mxu0 0.0
          %405 = vmatprep.subr.mxu0 0.0
          %406 = vmatpush1.msra.mxu0 0.0
          %407 = vmatprep.subr.mxu0 0.0
          %408 = vmatpush1.msra.mxu0 0.0
          %409 = vmatprep.subr.mxu0 0.0
          %410 = vmatpush1.msra.mxu0 0.0
          %411 = vmatprep.subr.mxu0 0.0
          %412 = vmatpush1.msra.mxu0 0.0
          %413 = vmatprep.subr.mxu0 0.0
          %414 = vmatpush1.msra.mxu0 0.0
          %415 = vmatprep.mubr.f32.mxu0 0.0
          %416 = vmatmul.mubr.f32.gmra.mrb[0].mxu0 %v349
          %v417 = vpop.f32.mrb[0].mxu0
          %v418 = vadd.f32 %v346, %v417
          %v419 = vpop.f32.mrb[0].mxu0
          %420 = vdwg.mxu0
          %v421 = vmax.f32 %v418, 0.0
          %v422 = vld [vmem:[%s3] sm:$0xff]
          %v423 = vld [vmem:[%s3 + $0x8] sm:$0xff]
          %v424 = vld [vmem:[%s3 + $0x10] sm:$0xff]
          %v425 = vld [vmem:[%s3 + $0x18] sm:$0xff]
          %v426 = vld [vmem:[%s4] sm:$0x1]
          %v428 = vlaneseq
          %v429 = vshrl.u32 %v428, 7
          %v430 = vsub.s32 0, %v429
          %v431 = vrot.slane %v426, %v430
          %v434 = vsel %vm291, %v421, 0
          %436 = vmatprep.subr.mxu0 0.0
          %437 = vmatpush1.msra.mxu0 %v422
          %438 = vmatprep.subr.mxu0 0.0
          %439 = vmatpush1.msra.mxu0 %v423
          %440 = vmatprep.subr.mxu0 0.0
          %441 = vmatpush1.msra.mxu0 %v424
          %442 = vmatprep.subr.mxu0 0.0
          %443 = vmatpush1.msra.mxu0 %v425
          %444 = vmatprep.subr.mxu0 0.0
          %445 = vmatpush1.msra.mxu0 0.0
          %446 = vmatprep.subr.mxu0 0.0
          %447 = vmatpush1.msra.mxu0 0.0
          %448 = vmatprep.subr.mxu0 0.0
          %449 = vmatpush1.msra.mxu0 0.0
          %450 = vmatprep.subr.mxu0 0.0
          %451 = vmatpush1.msra.mxu0 0.0
          %452 = vmatprep.subr.mxu0 0.0
          %453 = vmatpush1.msra.mxu0 0.0
          %454 = vmatprep.subr.mxu0 0.0
          %455 = vmatpush1.msra.mxu0 0.0
          %456 = vmatprep.subr.mxu0 0.0
          %457 = vmatpush1.msra.mxu0 0.0
          %458 = vmatprep.subr.mxu0 0.0
          %459 = vmatpush1.msra.mxu0 0.0
          %460 = vmatprep.subr.mxu0 0.0
          %461 = vmatpush1.msra.mxu0 0.0
          %462 = vmatprep.subr.mxu0 0.0
          %463 = vmatpush1.msra.mxu0 0.0
          %464 = vmatprep.subr.mxu0 0.0
          %465 = vmatpush1.msra.mxu0 0.0
          %466 = vmatprep.subr.mxu0 0.0
          %467 = vmatpush1.msra.mxu0 0.0
          %468 = vmatprep.subr.mxu0 0.0
          %469 = vmatpush1.msra.mxu0 0.0
          %470 = vmatprep.subr.mxu0 0.0
          %471 = vmatpush1.msra.mxu0 0.0
          %472 = vmatprep.subr.mxu0 0.0
          %473 = vmatpush1.msra.mxu0 0.0
          %474 = vmatprep.subr.mxu0 0.0
          %475 = vmatpush1.msra.mxu0 0.0
          %476 = vmatprep.subr.mxu0 0.0
          %477 = vmatpush1.msra.mxu0 0.0
          %478 = vmatprep.subr.mxu0 0.0
          %479 = vmatpush1.msra.mxu0 0.0
          %480 = vmatprep.subr.mxu0 0.0
          %481 = vmatpush1.msra.mxu0 0.0
          %482 = vmatprep.subr.mxu0 0.0
          %483 = vmatpush1.msra.mxu0 0.0
          %484 = vmatprep.subr.mxu0 0.0
          %485 = vmatpush1.msra.mxu0 0.0
          %486 = vmatprep.subr.mxu0 0.0
          %487 = vmatpush1.msra.mxu0 0.0
          %488 = vmatprep.subr.mxu0 0.0
          %489 = vmatpush1.msra.mxu0 0.0
          %490 = vmatprep.subr.mxu0 0.0
          %491 = vmatpush1.msra.mxu0 0.0
          %492 = vmatprep.subr.mxu0 0.0
          %493 = vmatpush1.msra.mxu0 0.0
          %494 = vmatprep.subr.mxu0 0.0
          %495 = vmatpush1.msra.mxu0 0.0
          %496 = vmatprep.subr.mxu0 0.0
          %497 = vmatpush1.msra.mxu0 0.0
          %498 = vmatprep.subr.mxu0 0.0
          %499 = vmatpush1.msra.mxu0 0.0
          %500 = vmatprep.mubr.f32.mxu0 0.0
          %501 = vmatmul.mubr.f32.gmra.mrb[0].mxu0 %v434
          %v502 = vpop.f32.mrb[0].mxu0
          %v503 = vadd.f32 %v431, %v502
          %v504 = vpop.f32.mrb[0].mxu0
          %505 = vdwg.mxu0
          %506 = vst [vmem:[#allocation4] sm:$0x7] %v503
        $region86: #{tpu_custom_call.1} parent=73 // pred_fallthru
          _
        // Predicated region
        $region87: #{tpu_custom_call.1} parent=73 // pred_check
          %p507 = pneg %p159
        $region88: #{tpu_custom_call.1} parent=73 // pred_check_branch
          %509 = sbr.rel (%p507) target = $region90
        $region89: #{tpu_custom_call.1} parent=73 // pred_region
          %s511 = ssub.s32 64, 64
          %512 = vsyncadd [#allocation5], %s511
          %s513 = smul.addr %s21, 64
          %s514 = scalar_lea.hbm %s5, %s513
          %s516 = sshll.u32 [#allocation4], 4
          %s517 = int_to_ptr.vmem [resolvable:$true] %s516
          %519 = dma.vmem_to_hbm [thread:$0]  %s517, 64, %s514, [#allocation5]
        $region90: #{tpu_custom_call.1} parent=73 // pred_fallthru
          _
        // Predicated region
        $region91: #{tpu_custom_call.1} parent=73 // pred_check
          %p520 = pneg %p159
        $region92: #{tpu_custom_call.1} parent=73 // pred_check_branch
          %522 = sbr.rel (%p520) target = $region94
        $region93: #{tpu_custom_call.1} parent=73 // pred_region
          %523 = dma.done [#allocation5], 64
        $region94: #{tpu_custom_call.1} parent=73 // pred_fallthru
          _
      $region74: #{tpu_custom_call.1} parent=5 // pred_fallthru
        _
      %p524 = scmp.le.s32.totalorder 2, %s12
      // Predicated region
      $region95: #{tpu_custom_call.1} parent=5 // pred_check
        %p525 = pneg %p524
      $region96: #{tpu_custom_call.1} parent=5 // pred_check_branch
        %527 = sbr.rel (%p525) target = $region98
      $region97: #{tpu_custom_call.1} parent=5 // pred_region
        %s528 = ssub.s32 %s12, 2
      $region98: #{tpu_custom_call.1} parent=5 // pred_fallthru
        _
    $region6: #{tpu_custom_call.1} parent=1 // loop_footer
      %s16 = sadd.s32 1, %s12
    $region7: #{tpu_custom_call.1} parent=1 // loop_footer_branch
      %11 = sbr.rel target = $region3
    $region8: #{tpu_custom_call.1} parent=1 // loop_exit
      _
    %529 = vsyncpa [#allocation5], 1
    %s530 = scalar_lea.sflag [#allocation5], 1
    %531 = vsyncpa %s530, 1

</llo_original>
